<compile_context>
chip_gen: v7x
topology: tpu7x:2x2x1
jax: 0.10.0
libtpu: 0.0.40
codegen_flags: <defaults>
</compile_context>

<pallas_src>
import functools
from typing import NamedTuple, Optional

import jax
import jax.numpy as jnp
from jax.experimental import pallas as pl
from jax.experimental.pallas import tpu as pltpu


def _round_up(x: int, m: int) -> int:
    return ((x + m - 1) // m) * m


def _cdiv(a: int, b: int) -> int:
    return (a + b - 1) // b


def _tpu_vmem_and_cores():
    """Best-effort (per-TensorCore VMEM bytes, TensorCores per chip)."""
    vmem = 64 << 20  # conservative fallback, valid on every generation
    cores = 1
    try:
        info = pltpu.get_tpu_info()
        for name in ("vmem_capacity_bytes", "vmem_bytes", "vmem_size_bytes"):
            v = getattr(info, name, None)
            if v:
                vmem = int(v)
                break
        cores_found = False
        for name in ("num_tensorcores", "tensorcore_count", "num_cores",
                     "cores_per_chip"):
            c = getattr(info, name, None)
            if c:
                cores = int(c)
                cores_found = True
                break
        if not cores_found:
            # Heuristic: v7x exposes ~64 MiB/TC and has 2 TCs; v5e/v6e have
            # 128 MiB and a single TC.
            cores = 2 if vmem <= (64 << 20) else 1
    except Exception:
        pass
    return vmem, cores


def gmu_kernel(x1_ref, x2_ref, w1f_ref, w2f_ref, o_ref, *, dout_pad, act_dtype):
    # Fused projections: columns [0:dout_pad] are the hidden weights, columns
    # [dout_pad:2*dout_pad] are this input's half of the gate weights.
    p1 = jnp.dot(x1_ref[...], w1f_ref[...], preferred_element_type=jnp.float32)
    p2 = jnp.dot(x2_ref[...], w2f_ref[...], preferred_element_type=jnp.float32)
    if act_dtype is not None:
        # bf16 transcendentals/blend (v6e/v7x EUP fast path); keep f32 on v5e.
        p1 = p1.astype(act_dtype)
        p2 = p2.astype(act_dtype)

    h1 = jnp.tanh(p1[:, :dout_pad])
    h2 = jnp.tanh(p2[:, :dout_pad])
    # sigmoid(cat(x1, x2) @ Wz^T) == sigmoid(x1 @ Wz1 + x2 @ Wz2)
    z = jax.nn.sigmoid(p1[:, dout_pad:] + p2[:, dout_pad:])

    # z*h1 + (1-z)*h2 == h2 + z*(h1-h2)  (one fewer VPU multiply)
    o_ref[...] = (h2 + z * (h1 - h2)).astype(o_ref.dtype)


class GMUFusedWeights(NamedTuple):
    w1f: jax.Array   # [D1, 2*dout_pad] == [W1^T | Wz1^T], zero-padded to lanes
    w2f: jax.Array   # [D2, 2*dout_pad] == [W2^T | Wz2^T]
    dout: int
    dout_pad: int


def gmu_prepare_weights(w1, w2, wz, *, mxu_dtype=None) -> GMUFusedWeights:
    """One-time weight glue, hoisted out of the per-call hot path.

    w1: [Dout, D1], w2: [Dout, D2], wz: [Dout, D1+D2]  (PyTorch Linear layout).
    Callers should cache the returned fused weights across forward calls.
    """
    dout, d1 = w1.shape
    _, d2 = w2.shape
    assert wz.shape == (dout, d1 + d2)

    dout_pad = _round_up(dout, 128)   # lane-dense matmul N dim & output stores
    pad_n = dout_pad - dout

    def _pad_cols(w):
        return jnp.pad(w, ((0, 0), (0, pad_n))) if pad_n else w

    w1f = jnp.concatenate([_pad_cols(w1.T), _pad_cols(wz[:, :d1].T)], axis=1)
    w2f = jnp.concatenate([_pad_cols(w2.T), _pad_cols(wz[:, d1:].T)], axis=1)
    if mxu_dtype is not None:
        w1f = w1f.astype(mxu_dtype)
        w2f = w2f.astype(mxu_dtype)
    return GMUFusedWeights(w1f, w2f, dout, dout_pad)


def gmu_forward_fused(x1, x2, fused: GMUFusedWeights, *, tb: int = 512,
                      mxu_dtype=None, act_dtype=None,
                      input_buffer_count: int = 2, unpad: bool = True):
    """GMU forward from pre-fused weights.

    x1: [B, D1], x2: [B, D2].  Set unpad=False to keep the padded output slab
    (avoids a wrapper-side HBM->HBM slice when the consumer tolerates padding).
    """
    B, d1 = x1.shape
    B2, d2 = x2.shape
    assert B == B2
    w1f, w2f, dout, dout_pad = fused
    assert w1f.shape == (d1, 2 * dout_pad) and w2f.shape == (d2, 2 * dout_pad)
    out_dtype = x1.dtype

    if mxu_dtype is not None:
        x1 = x1.astype(mxu_dtype)
        x2 = x2.astype(mxu_dtype)
        if w1f.dtype != mxu_dtype:
            w1f = w1f.astype(mxu_dtype)
            w2f = w2f.astype(mxu_dtype)

    vmem_cap, cores = _tpu_vmem_and_cores()
    vmem_budget = max(32 << 20, vmem_cap - (24 << 20))

    in_bytes = jnp.dtype(x1.dtype).itemsize
    w_bytes = jnp.dtype(w1f.dtype).itemsize
    out_bytes = jnp.dtype(out_dtype).itemsize
    act_bytes = jnp.dtype(act_dtype).itemsize if act_dtype is not None else 4

    def _est(tbv, wbuf):
        return (
            input_buffer_count * tbv * (d1 + d2) * in_bytes   # x1/x2 tiles
            + 2 * tbv * dout_pad * out_bytes                  # output tile (dbl-buf)
            + wbuf * (d1 + d2) * 2 * dout_pad * w_bytes       # resident fused weights
            + 2 * tbv * 2 * dout_pad * 4                      # p1/p2 f32 slabs
            + 6 * tbv * dout_pad * act_bytes                  # h1/h2/z/diff temporaries
        )

    # ---- batch tiling: balanced tiles, megacore-aware ----
    tb_req = max(8, min(tb, _round_up(B, 8)))
    n_tiles = _cdiv(B, tb_req)
    if cores >= 2 and B >= 8 * cores:
        # Keep both v7x TensorCores busy on the "parallel" batch axis.
        n_tiles = _round_up(max(n_tiles, cores), cores)
    tb_eff = _round_up(_cdiv(B, n_tiles), 8)
    # Shrink the batch tile until compiler-managed VMEM (incl. f32 intermediates
    # and double-buffered weights, conservatively) fits the budget.
    while tb_eff > 8 and _est(tb_eff, wbuf=2) > vmem_budget:
        n_tiles *= 2
        tb_eff = _round_up(_cdiv(B, n_tiles), 8)
    b_pad = _round_up(B, tb_eff)
    grid = (b_pad // tb_eff,)

    if b_pad != B:
        x1 = jnp.pad(x1, ((0, b_pad - B), (0, 0)))
        x2 = jnp.pad(x2, ((0, b_pad - B), (0, 0)))

    kernel = functools.partial(gmu_kernel, dout_pad=dout_pad, act_dtype=act_dtype)

    def _x_spec(d):
        if input_buffer_count != 2:
            return pl.BlockSpec((tb_eff, d), lambda i: (i, 0),
                                pipeline_mode=pl.Buffered(input_buffer_count))
        return pl.BlockSpec((tb_eff, d), lambda i: (i, 0))

    def _run(weight_buffer_count):
        if weight_buffer_count == 1:
            def _w_spec(d):
                # Grid-invariant weights: single-buffer (halves VMEM residency).
                return pl.BlockSpec((d, 2 * dout_pad), lambda i: (0, 0),
                                    pipeline_mode=pl.Buffered(1))
        else:
            def _w_spec(d):
                return pl.BlockSpec((d, 2 * dout_pad), lambda i: (0, 0))

        vmem_limit = int(min(
            vmem_budget,
            max(32 << 20, _est(tb_eff, weight_buffer_count) + (16 << 20))))

        return pl.pallas_call(
            kernel,
            out_shape=jax.ShapeDtypeStruct((b_pad, dout_pad), out_dtype),
            grid_spec=pltpu.PrefetchScalarGridSpec(
                num_scalar_prefetch=0,
                grid=grid,
                in_specs=[
                    _x_spec(d1),    # x1 tile (streamed)
                    _x_spec(d2),    # x2 tile (streamed)
                    _w_spec(d1),    # fused W1|Wz1 (resident, grid-invariant)
                    _w_spec(d2),    # fused W2|Wz2 (resident, grid-invariant)
                ],
                out_specs=pl.BlockSpec((tb_eff, dout_pad), lambda i: (i, 0)),
            ),
            compiler_params=pltpu.CompilerParams(
                dimension_semantics=("parallel",),
                vmem_limit_bytes=vmem_limit,
            ),
        )(x1, x2, w1f, w2f)

    try:
        out = _run(weight_buffer_count=1)
    except Exception:
        # Graceful fallback if Buffered(1) / pipeline_mode is unsupported.
        out = _run(weight_buffer_count=2)

    if unpad and (b_pad != B or dout_pad != dout):
        out = out[:B, :dout]
    return out


def gmu_forward(x1, x2, w1, w2, wz, *, tb=512, mxu_dtype=None, act_dtype=None,
                **kwargs):
    """One-shot convenience wrapper (prepares fused weights per call).

    For repeated calls, use gmu_prepare_weights() once + gmu_forward_fused().
    """
    fused = gmu_prepare_weights(w1, w2, wz, mxu_dtype=mxu_dtype)
    return gmu_forward_fused(x1, x2, fused, tb=tb, mxu_dtype=mxu_dtype,
                             act_dtype=act_dtype, **kwargs)


def gmu_reference(x1, x2, w1, w2, wz):
    """Pure-JAX reference mirroring the PyTorch forward (weights [out, in])."""
    h1 = jnp.tanh(x1 @ w1.T)
    h2 = jnp.tanh(x2 @ w2.T)
    z = jax.nn.sigmoid(jnp.concatenate([x1, x2], axis=-1) @ wz.T)
    return z * h1 + (1.0 - z) * h2


if __name__ == "__main__":
    # Small shapes consistent with the module's constraint:
    # dim_in1 + dim_in2 == 2 * dim_out  (hidden_sigmoid expects dim_out*2 inputs)
    B, D1, D2, Dout = 16, 32, 32, 32

    key = jax.random.PRNGKey(0)
    k_x1, k_x2, k_w1, k_w2, k_wz = jax.random.split(key, 5)

    x1 = jax.random.normal(k_x1, (B, D1), dtype=jnp.float32)
    x2 = jax.random.normal(k_x2, (B, D2), dtype=jnp.float32)

    # PyTorch Linear weight layout [out, in], ~1/sqrt(fan_in) scaling.
    w1 = jax.random.uniform(k_w1, (Dout, D1), jnp.float32, -1.0, 1.0) / jnp.sqrt(D1)
    w2 = jax.random.uniform(k_w2, (Dout, D2), jnp.float32, -1.0, 1.0) / jnp.sqrt(D2)
    wz = jax.random.uniform(k_wz, (Dout, D1 + D2), jnp.float32, -1.0, 1.0) / jnp.sqrt(D1 + D2)

    ref = gmu_reference(x1, x2, w1, w2, wz)

    # Prepare fused weights ONCE (hoisted out of the hot path), reuse across calls.
    fused_f32 = gmu_prepare_weights(w1, w2, wz)

    # f32 path (tight check)
    out = jax.block_until_ready(gmu_forward_fused(x1, x2, fused_f32))
    assert out.shape == (B, Dout)
    assert jnp.allclose(out, ref, atol=1e-5, rtol=1e-5), (
        f"f32 max abs err {jnp.max(jnp.abs(out - ref))}"
    )

    # Non-tile-multiple batch (exercises balanced tiling + padding path)
    Bo = 13
    out_odd = jax.block_until_ready(gmu_forward_fused(x1[:Bo], x2[:Bo], fused_f32))
    assert out_odd.shape == (Bo, Dout)
    assert jnp.allclose(out_odd, ref[:Bo], atol=1e-5, rtol=1e-5), (
        f"odd-batch max abs err {jnp.max(jnp.abs(out_odd - ref[:Bo]))}"
    )

    # bf16 MXU operands + bf16 transcendentals (v6e/v7x fast path; loose check).
    fused_bf16 = gmu_prepare_weights(w1, w2, wz, mxu_dtype=jnp.bfloat16)
    out_bf16 = jax.block_until_ready(
        gmu_forward_fused(x1, x2, fused_bf16,
                          mxu_dtype=jnp.bfloat16, act_dtype=jnp.bfloat16))
    assert out_bf16.shape == (B, Dout)
    assert jnp.allclose(out_bf16.astype(jnp.float32), ref, atol=4e-2, rtol=4e-2), (
        f"bf16 max abs err {jnp.max(jnp.abs(out_bf16.astype(jnp.float32) - ref))}"
    )

    print("KERNEL_OK")
</pallas_src>

<mosaic_0001>
module attributes {stable_mosaic.version = 11 : i64} {
  func.func @gmu_kernel(%arg0: i32, %arg1: memref<16x32xf32, #tpu.memory_space<vmem>>, %arg2: memref<16x32xf32, #tpu.memory_space<vmem>>, %arg3: memref<32x256xf32, #tpu.memory_space<vmem>>, %arg4: memref<32x256xf32, #tpu.memory_space<vmem>>, %arg5: memref<16x128xf32, #tpu.memory_space<vmem>>) attributes {dimension_semantics = [#tpu.dimension_semantics<parallel>], iteration_bounds = array<i64: 1>, scalar_prefetch = 0 : i64, scratch_operands = 0 : i64, tpu.core_type = #tpu.core_type<tc>, window_params = [{transform_indices = @transform_0, window_bounds = array<i64: 16, 32>}, {transform_indices = @transform_1, window_bounds = array<i64: 16, 32>}, {pipeline_mode = #tpu.pipeline_mode<synchronous>, transform_indices = @transform_2, window_bounds = array<i64: 32, 256>}, {pipeline_mode = #tpu.pipeline_mode<synchronous>, transform_indices = @transform_3, window_bounds = array<i64: 32, 256>}, {transform_indices = @transform_4, window_bounds = array<i64: 16, 128>}]} {
    %c0 = arith.constant 0 : index
    %c0_0 = arith.constant 0 : index
    %0 = vector.load %arg1[%c0, %c0_0] : memref<16x32xf32, #tpu.memory_space<vmem>>, vector<16x32xf32>
    %c0_1 = arith.constant 0 : index
    %c0_2 = arith.constant 0 : index
    %1 = vector.load %arg3[%c0_1, %c0_2] : memref<32x256xf32, #tpu.memory_space<vmem>>, vector<32x256xf32>
    %cst = arith.constant dense<0.000000e+00> : vector<16x256xf32>
    %2 = tpu.matmul %0, %1, %cst {dimension_numbers = #tpu.dot_dimension_numbers<[1], [0], [0], [1], [0, 0, 1, 1], [], []>} : vector<16x32xf32>, vector<32x256xf32>, vector<16x256xf32> -> vector<16x256xf32>
    %c0_3 = arith.constant 0 : index
    %c0_4 = arith.constant 0 : index
    %3 = vector.load %arg2[%c0_3, %c0_4] : memref<16x32xf32, #tpu.memory_space<vmem>>, vector<16x32xf32>
    %c0_5 = arith.constant 0 : index
    %c0_6 = arith.constant 0 : index
    %4 = vector.load %arg4[%c0_5, %c0_6] : memref<32x256xf32, #tpu.memory_space<vmem>>, vector<32x256xf32>
    %cst_7 = arith.constant dense<0.000000e+00> : vector<16x256xf32>
    %5 = tpu.matmul %3, %4, %cst_7 {dimension_numbers = #tpu.dot_dimension_numbers<[1], [0], [0], [1], [0, 0, 1, 1], [], []>} : vector<16x32xf32>, vector<32x256xf32>, vector<16x256xf32> -> vector<16x256xf32>
    %6 = vector.extract_strided_slice %2 {offsets = [0, 0], sizes = [16, 128], strides = [1, 1]} : vector<16x256xf32> to vector<16x128xf32>
    %7 = math.tanh %6 : vector<16x128xf32>
    %8 = vector.extract_strided_slice %5 {offsets = [0, 0], sizes = [16, 128], strides = [1, 1]} : vector<16x256xf32> to vector<16x128xf32>
    %9 = math.tanh %8 : vector<16x128xf32>
    %10 = vector.extract_strided_slice %2 {offsets = [0, 128], sizes = [16, 128], strides = [1, 1]} : vector<16x256xf32> to vector<16x128xf32>
    %11 = vector.extract_strided_slice %5 {offsets = [0, 128], sizes = [16, 128], strides = [1, 1]} : vector<16x256xf32> to vector<16x128xf32>
    %12 = arith.addf %10, %11 : vector<16x128xf32>
    %13 = arith.negf %12 : vector<16x128xf32>
    %14 = math.exp %13 : vector<16x128xf32>
    %cst_8 = arith.constant 1.000000e+00 : f32
    %15 = vector.broadcast %cst_8 : f32 to vector<16x128xf32>
    %16 = arith.addf %15, %14 : vector<16x128xf32>
    %17 = arith.divf %15, %16 : vector<16x128xf32>
    %18 = arith.subf %7, %9 : vector<16x128xf32>
    %19 = arith.mulf %17, %18 : vector<16x128xf32>
    %20 = arith.addf %9, %19 : vector<16x128xf32>
    %c0_9 = arith.constant 0 : index
    %c0_10 = arith.constant 0 : index
    %21 = vector.load %arg5[%c0_9, %c0_10] : memref<16x128xf32, #tpu.memory_space<vmem>>, vector<16x128xf32>
    tpu.vector_store %arg5[%c0_9, %c0_10], %20 {strides = array<i32>} : memref<16x128xf32, #tpu.memory_space<vmem>>, vector<16x128xf32>,
    return
  }
  func.func @transform_0(%arg0: i32) -> (i32, i32) {
    %c0_i32 = arith.constant 0 : i32
    %c0_i32_0 = arith.constant 0 : i32
    return %arg0, %c0_i32 : i32, i32
  }
  func.func @transform_1(%arg0: i32) -> (i32, i32) {
    %c0_i32 = arith.constant 0 : i32
    %c0_i32_0 = arith.constant 0 : i32
    return %arg0, %c0_i32 : i32, i32
  }
  func.func @transform_2(%arg0: i32) -> (i32, i32) {
    %c0_i32 = arith.constant 0 : i32
    %c0_i32_0 = arith.constant 0 : i32
    %c0_i32_1 = arith.constant 0 : i32
    return %c0_i32, %c0_i32_0 : i32, i32
  }
  func.func @transform_3(%arg0: i32) -> (i32, i32) {
    %c0_i32 = arith.constant 0 : i32
    %c0_i32_0 = arith.constant 0 : i32
    %c0_i32_1 = arith.constant 0 : i32
    return %c0_i32, %c0_i32_0 : i32, i32
  }
  func.func @transform_4(%arg0: i32) -> (i32, i32) {
    %c0_i32 = arith.constant 0 : i32
    %c0_i32_0 = arith.constant 0 : i32
    return %arg0, %c0_i32 : i32, i32
  }
}

module attributes {stable_mosaic.version = 11 : i64} {
  func.func @gmu_kernel(%arg0: i32, %arg1: memref<16x32xf32, #tpu.memory_space<vmem>>, %arg2: memref<16x32xf32, #tpu.memory_space<vmem>>, %arg3: memref<32x256xf32, #tpu.memory_space<vmem>>, %arg4: memref<32x256xf32, #tpu.memory_space<vmem>>, %arg5: memref<16x128xf32, #tpu.memory_space<vmem>>) attributes {dimension_semantics = [#tpu.dimension_semantics<parallel>], iteration_bounds = array<i64: 1>, scalar_prefetch = 0 : i64, scratch_operands = 0 : i64, tpu.core_type = #tpu.core_type<tc>, window_params = [{transform_indices = @transform_0, window_bounds = array<i64: 16, 32>}, {transform_indices = @transform_1, window_bounds = array<i64: 16, 32>}, {pipeline_mode = #tpu.pipeline_mode<synchronous>, transform_indices = @transform_2, window_bounds = array<i64: 32, 256>}, {pipeline_mode = #tpu.pipeline_mode<synchronous>, transform_indices = @transform_3, window_bounds = array<i64: 32, 256>}, {transform_indices = @transform_4, window_bounds = array<i64: 16, 128>}]} {
    %c0 = arith.constant 0 : index
    %c0_0 = arith.constant 0 : index
    %0 = vector.load %arg1[%c0, %c0_0] : memref<16x32xf32, #tpu.memory_space<vmem>>, vector<16x32xf32>
    %c0_1 = arith.constant 0 : index
    %c0_2 = arith.constant 0 : index
    %1 = vector.load %arg3[%c0_1, %c0_2] : memref<32x256xf32, #tpu.memory_space<vmem>>, vector<32x256xf32>
    %cst = arith.constant dense<0.000000e+00> : vector<16x256xf32>
    %2 = tpu.matmul %0, %1, %cst {dimension_numbers = #tpu.dot_dimension_numbers<[1], [0], [0], [1], [0, 0, 1, 1], [], []>} : vector<16x32xf32>, vector<32x256xf32>, vector<16x256xf32> -> vector<16x256xf32>
    %c0_3 = arith.constant 0 : index
    %c0_4 = arith.constant 0 : index
    %3 = vector.load %arg2[%c0_3, %c0_4] : memref<16x32xf32, #tpu.memory_space<vmem>>, vector<16x32xf32>
    %c0_5 = arith.constant 0 : index
    %c0_6 = arith.constant 0 : index
    %4 = vector.load %arg4[%c0_5, %c0_6] : memref<32x256xf32, #tpu.memory_space<vmem>>, vector<32x256xf32>
    %cst_7 = arith.constant dense<0.000000e+00> : vector<16x256xf32>
    %5 = tpu.matmul %3, %4, %cst_7 {dimension_numbers = #tpu.dot_dimension_numbers<[1], [0], [0], [1], [0, 0, 1, 1], [], []>} : vector<16x32xf32>, vector<32x256xf32>, vector<16x256xf32> -> vector<16x256xf32>
    %6 = vector.extract_strided_slice %2 {offsets = [0, 0], sizes = [16, 128], strides = [1, 1]} : vector<16x256xf32> to vector<16x128xf32>
    %7 = math.tanh %6 : vector<16x128xf32>
    %8 = vector.extract_strided_slice %5 {offsets = [0, 0], sizes = [16, 128], strides = [1, 1]} : vector<16x256xf32> to vector<16x128xf32>
    %9 = math.tanh %8 : vector<16x128xf32>
    %10 = vector.extract_strided_slice %2 {offsets = [0, 128], sizes = [16, 128], strides = [1, 1]} : vector<16x256xf32> to vector<16x128xf32>
    %11 = vector.extract_strided_slice %5 {offsets = [0, 128], sizes = [16, 128], strides = [1, 1]} : vector<16x256xf32> to vector<16x128xf32>
    %12 = arith.addf %10, %11 : vector<16x128xf32>
    %13 = arith.negf %12 : vector<16x128xf32>
    %14 = math.exp %13 : vector<16x128xf32>
    %cst_8 = arith.constant 1.000000e+00 : f32
    %15 = vector.broadcast %cst_8 : f32 to vector<16x128xf32>
    %16 = arith.addf %15, %14 : vector<16x128xf32>
    %17 = arith.divf %15, %16 : vector<16x128xf32>
    %18 = arith.subf %7, %9 : vector<16x128xf32>
    %19 = arith.mulf %17, %18 : vector<16x128xf32>
    %20 = arith.addf %9, %19 : vector<16x128xf32>
    %c0_9 = arith.constant 0 : index
    %c0_10 = arith.constant 0 : index
    %21 = vector.load %arg5[%c0_9, %c0_10] : memref<16x128xf32, #tpu.memory_space<vmem>>, vector<16x128xf32>
    tpu.vector_store %arg5[%c0_9, %c0_10], %20 {strides = array<i32>} : memref<16x128xf32, #tpu.memory_space<vmem>>, vector<16x128xf32>,
    return
  }
  func.func @transform_0(%arg0: i32) -> (i32, i32) {
    %c0_i32 = arith.constant 0 : i32
    %c0_i32_0 = arith.constant 0 : i32
    return %arg0, %c0_i32 : i32, i32
  }
  func.func @transform_1(%arg0: i32) -> (i32, i32) {
    %c0_i32 = arith.constant 0 : i32
    %c0_i32_0 = arith.constant 0 : i32
    return %arg0, %c0_i32 : i32, i32
  }
  func.func @transform_2(%arg0: i32) -> (i32, i32) {
    %c0_i32 = arith.constant 0 : i32
    %c0_i32_0 = arith.constant 0 : i32
    %c0_i32_1 = arith.constant 0 : i32
    return %c0_i32, %c0_i32_0 : i32, i32
  }
  func.func @transform_3(%arg0: i32) -> (i32, i32) {
    %c0_i32 = arith.constant 0 : i32
    %c0_i32_0 = arith.constant 0 : i32
    %c0_i32_1 = arith.constant 0 : i32
    return %c0_i32, %c0_i32_0 : i32, i32
  }
  func.func @transform_4(%arg0: i32) -> (i32, i32) {
    %c0_i32 = arith.constant 0 : i32
    %c0_i32_0 = arith.constant 0 : i32
    return %arg0, %c0_i32 : i32, i32
  }
}

</mosaic_0001>

<llo_original>
// kernel: tpu_custom_call.1
$region0: #{tpu_custom_call.1}
  #allocation0 [shape = 'u32[]', space=smem, size = 0x4, offset = 0x4, fixed_abs, tag = 'smem constant byte address 0x4 - core index']
  #allocation1 [shape = 'u32[144,128]{1,0:T(1,128)}', space=vmem, size = 0x12000, scoped, tag = 'internal scratch']
  %s0 = inlined_call_operand.hbm [shape: f32[16,32], index: 0, kind: input, shape index: {}]
  %s1 = inlined_call_operand.hbm [shape: f32[16,32], index: 1, kind: input, shape index: {}]
  %s2 = inlined_call_operand.hbm [shape: f32[32,256], index: 2, kind: input, shape index: {}]
  %s3 = inlined_call_operand.hbm [shape: f32[32,256], index: 3, kind: input, shape index: {}]
  %s4 = inlined_call_operand.hbm [shape: f32[16,128], index: 4, kind: output, shape index: {}]
  %s5 = sld [smem:[#allocation0]]
  $region42: #{tpu_custom_call.1} parent=0
    _
  %s7 = ssub.s32 1, %s5
  %s8 = scalar_select 0, %s7, %s5
  $region1: #{tpu_custom_call.1} parent=0
    #allocation2 [shape = 'u8[8192]{0}', space=vmem, size = 0x2000, scoped, tag = 'input window, operand 0, single buffered']
    #allocation3 [shape = 's32[1]{0}', space=sflag, size = 0x4, scoped, tag = 'scoped memory for tpu_custom_call.1']
    #allocation4 [shape = 's32[1]{0}', space=sflag, size = 0x4, scoped, tag = 'scoped memory for tpu_custom_call.1']
    #allocation5 [shape = 'u8[8192]{0}', space=vmem, size = 0x2000, scoped, tag = 'input window, operand 1, single buffered']
    #allocation6 [shape = 's32[1]{0}', space=sflag, size = 0x4, scoped, tag = 'scoped memory for tpu_custom_call.1']
    #allocation7 [shape = 'u8[32768]{0}', space=vmem, size = 0x8000, scoped, tag = 'input window, operand 2, single buffered']
    #allocation8 [shape = 'u8[32768]{0}', space=vmem, size = 0x8000, scoped, tag = 'input window, operand 3, single buffered']
    #allocation9 [shape = 's32[1]{0}', space=sflag, size = 0x4, scoped, tag = 'scoped memory for tpu_custom_call.1']
    #allocation10 [shape = 'u8[8192]{0}', space=vmem, size = 0x2000, scoped, tag = 'output window, operand 0, single buffered']
    %9 = vsyncpa [#allocation3], 0
    %10 = vsyncpa [#allocation6], 0
    %11 = vsyncpa [#allocation9], 0
    %12 = vsyncpa [#allocation4], 0
    // Predicated region
    $region2: #{tpu_custom_call.1} parent=1 // pred_check
      _
    $region3: #{tpu_custom_call.1} parent=1 // pred_check_branch
      %14 = sbr.rel (0) target = $region5
    $region4: #{tpu_custom_call.1} parent=1 // pred_region
      %s16 = ssub.s32 256, 256
      %17 = vsyncadd [#allocation3], %s16
      %s18 = sshll.u32 [#allocation2], 4
      %s19 = int_to_ptr.vmem [resolvable:$true] %s18
      %24 = dma.hbm_to_vmem [thread:$0]  %s0, 256, %s19, [#allocation3], 128, 128, 8
    $region5: #{tpu_custom_call.1} parent=1 // pred_fallthru
      _
    // Predicated region
    $region6: #{tpu_custom_call.1} parent=1 // pred_check
      _
    $region7: #{tpu_custom_call.1} parent=1 // pred_check_branch
      %26 = sbr.rel (0) target = $region9
    $region8: #{tpu_custom_call.1} parent=1 // pred_region
      %s28 = ssub.s32 256, 256
      %29 = vsyncadd [#allocation6], %s28
      %s30 = sshll.u32 [#allocation5], 4
      %s31 = int_to_ptr.vmem [resolvable:$true] %s30
      %36 = dma.hbm_to_vmem [thread:$0]  %s1, 256, %s31, [#allocation6], 128, 128, 8
    $region9: #{tpu_custom_call.1} parent=1 // pred_fallthru
      _
    // Predicated region
    $region10: #{tpu_custom_call.1} parent=1 // pred_check
      _
    $region11: #{tpu_custom_call.1} parent=1 // pred_check_branch
      %38 = sbr.rel (0) target = $region13
    $region12: #{tpu_custom_call.1} parent=1 // pred_region
      %s40 = ssub.s32 1024, 1024
      %41 = vsyncadd [#allocation6], %s40
      %s42 = sshll.u32 [#allocation7], 4
      %s43 = int_to_ptr.vmem [resolvable:$true] %s42
      %48 = dma.hbm_to_vmem [thread:$0]  %s2, 1024, %s43, [#allocation6], 256, 256, 16
    $region13: #{tpu_custom_call.1} parent=1 // pred_fallthru
      _
    // Predicated region
    $region14: #{tpu_custom_call.1} parent=1 // pred_check
      _
    $region15: #{tpu_custom_call.1} parent=1 // pred_check_branch
      %50 = sbr.rel (0) target = $region17
    $region16: #{tpu_custom_call.1} parent=1 // pred_region
      %s52 = ssub.s32 1024, 1024
      %53 = vsyncadd [#allocation9], %s52
      %s54 = sshll.u32 [#allocation8], 4
      %s55 = int_to_ptr.vmem [resolvable:$true] %s54
      %60 = dma.hbm_to_vmem [thread:$0]  %s3, 1024, %s55, [#allocation9], 256, 256, 16
    $region17: #{tpu_custom_call.1} parent=1 // pred_fallthru
      _
    // Predicated region
    $region18: #{tpu_custom_call.1} parent=1 // pred_check
      _
    $region19: #{tpu_custom_call.1} parent=1 // pred_check_branch
      %62 = sbr.rel (0) target = $region21
    $region20: #{tpu_custom_call.1} parent=1 // pred_region
      %63 = dma.done [#allocation3], 256
    $region21: #{tpu_custom_call.1} parent=1 // pred_fallthru
      _
    // Predicated region
    $region22: #{tpu_custom_call.1} parent=1 // pred_check
      _
    $region23: #{tpu_custom_call.1} parent=1 // pred_check_branch
      %65 = sbr.rel (0) target = $region25
    $region24: #{tpu_custom_call.1} parent=1 // pred_region
      %66 = dma.done [#allocation6], 256
    $region25: #{tpu_custom_call.1} parent=1 // pred_fallthru
      _
    // Predicated region
    $region26: #{tpu_custom_call.1} parent=1 // pred_check
      _
    $region27: #{tpu_custom_call.1} parent=1 // pred_check_branch
      %68 = sbr.rel (0) target = $region29
    $region28: #{tpu_custom_call.1} parent=1 // pred_region
      %69 = dma.done [#allocation6], 1024
    $region29: #{tpu_custom_call.1} parent=1 // pred_fallthru
      _
    // Predicated region
    $region30: #{tpu_custom_call.1} parent=1 // pred_check
      _
    $region31: #{tpu_custom_call.1} parent=1 // pred_check_branch
      %71 = sbr.rel (0) target = $region33
    $region32: #{tpu_custom_call.1} parent=1 // pred_region
      %72 = dma.done [#allocation9], 1024
    $region33: #{tpu_custom_call.1} parent=1 // pred_fallthru
      _
    %v73 = vld [vmem:[#allocation2] sm:$0xff]
    %v74 = vld [vmem:[#allocation2 + $0x8] sm:$0xff]
    %v75 = vld [vmem:[#allocation7] sm:$0xff]
    %v76 = vld [vmem:[#allocation7 + $0x8] sm:$0xff]
    %v77 = vld [vmem:[#allocation7 + $0x10] sm:$0xff]
    %v78 = vld [vmem:[#allocation7 + $0x18] sm:$0xff]
    %v79 = vld [vmem:[#allocation7 + $0x20] sm:$0xff]
    %v80 = vld [vmem:[#allocation7 + $0x28] sm:$0xff]
    %v81 = vld [vmem:[#allocation7 + $0x30] sm:$0xff]
    %v82 = vld [vmem:[#allocation7 + $0x38] sm:$0xff]
    %vm83 = vcmask 261120
    %v85 = vsel %vm83, %v73, 0
    %v88 = vsel %vm83, %v74, 0
    %90 = vmatprep.subr.mxu0 %v76
    %91 = vmatpush1.msra.mxu0 %v75
    %92 = vmatprep.subr.mxu0 %v78
    %93 = vmatpush1.msra.mxu0 %v77
    %94 = vmatprep.subr.mxu0 %v80
    %95 = vmatpush1.msra.mxu0 %v79
    %96 = vmatprep.subr.mxu0 %v82
    %97 = vmatpush1.msra.mxu0 %v81
    %98 = vmatprep.subr.mxu0 0.0
    %99 = vmatpush1.msra.mxu0 0.0
    %100 = vmatprep.subr.mxu0 0.0
    %101 = vmatpush1.msra.mxu0 0.0
    %102 = vmatprep.subr.mxu0 0.0
    %103 = vmatpush1.msra.mxu0 0.0
    %104 = vmatprep.subr.mxu0 0.0
    %105 = vmatpush1.msra.mxu0 0.0
    %106 = vmatprep.subr.mxu0 0.0
    %107 = vmatpush1.msra.mxu0 0.0
    %108 = vmatprep.subr.mxu0 0.0
    %109 = vmatpush1.msra.mxu0 0.0
    %110 = vmatprep.subr.mxu0 0.0
    %111 = vmatpush1.msra.mxu0 0.0
    %112 = vmatprep.subr.mxu0 0.0
    %113 = vmatpush1.msra.mxu0 0.0
    %114 = vmatprep.subr.mxu0 0.0
    %115 = vmatpush1.msra.mxu0 0.0
    %116 = vmatprep.subr.mxu0 0.0
    %117 = vmatpush1.msra.mxu0 0.0
    %118 = vmatprep.subr.mxu0 0.0
    %119 = vmatpush1.msra.mxu0 0.0
    %120 = vmatprep.subr.mxu0 0.0
    %121 = vmatpush1.msra.mxu0 0.0
    %122 = vmatprep.subr.mxu0 0.0
    %123 = vmatpush1.msra.mxu0 0.0
    %124 = vmatprep.subr.mxu0 0.0
    %125 = vmatpush1.msra.mxu0 0.0
    %126 = vmatprep.subr.mxu0 0.0
    %127 = vmatpush1.msra.mxu0 0.0
    %128 = vmatprep.subr.mxu0 0.0
    %129 = vmatpush1.msra.mxu0 0.0
    %130 = vmatprep.subr.mxu0 0.0
    %131 = vmatpush1.msra.mxu0 0.0
    %132 = vmatprep.subr.mxu0 0.0
    %133 = vmatpush1.msra.mxu0 0.0
    %134 = vmatprep.subr.mxu0 0.0
    %135 = vmatpush1.msra.mxu0 0.0
    %136 = vmatprep.subr.mxu0 0.0
    %137 = vmatpush1.msra.mxu0 0.0
    %138 = vmatprep.subr.mxu0 0.0
    %139 = vmatpush1.msra.mxu0 0.0
    %140 = vmatprep.subr.mxu0 0.0
    %141 = vmatpush1.msra.mxu0 0.0
    %142 = vmatprep.subr.mxu0 0.0
    %143 = vmatpush1.msra.mxu0 0.0
    %144 = vmatprep.subr.mxu0 0.0
    %145 = vmatpush1.msra.mxu0 0.0
    %146 = vmatprep.subr.mxu0 0.0
    %147 = vmatpush1.msra.mxu0 0.0
    %148 = vmatprep.subr.mxu0 0.0
    %149 = vmatpush1.msra.mxu0 0.0
    %150 = vmatprep.subr.mxu0 0.0
    %151 = vmatpush1.msra.mxu0 0.0
    %152 = vmatprep.subr.mxu0 0.0
    %153 = vmatpush1.msra.mxu0 0.0
    %154 = vmatprep.mubr.f32.mxu0 0.0
    %155 = vmatmul.mubr.f32.gmra.mrb[0].mxu0 %v85
    %v156 = vpop.f32.mrb[0].mxu0
    %v157 = vadd.f32 0.0, %v156
    %v158 = vpop.f32.mrb[0].mxu0
    %v159 = vadd.f32 0.0, %v158
    %160 = vmatprep.mubr.f32.mxu0 0.0
    %161 = vmatmul.mubr.f32.gmra.mrb[0].mxu0 %v88
    %v162 = vpop.f32.mrb[0].mxu0
    %v163 = vadd.f32 0.0, %v162
    %v164 = vpop.f32.mrb[0].mxu0
    %v165 = vadd.f32 0.0, %v164
    %166 = vdwg.mxu0
    %v167 = vld [vmem:[#allocation5] sm:$0xff]
    %v168 = vld [vmem:[#allocation5 + $0x8] sm:$0xff]
    %v169 = vld [vmem:[#allocation8] sm:$0xff]
    %v170 = vld [vmem:[#allocation8 + $0x8] sm:$0xff]
    %v171 = vld [vmem:[#allocation8 + $0x10] sm:$0xff]
    %v172 = vld [vmem:[#allocation8 + $0x18] sm:$0xff]
    %v173 = vld [vmem:[#allocation8 + $0x20] sm:$0xff]
    %v174 = vld [vmem:[#allocation8 + $0x28] sm:$0xff]
    %v175 = vld [vmem:[#allocation8 + $0x30] sm:$0xff]
    %v176 = vld [vmem:[#allocation8 + $0x38] sm:$0xff]
    %v178 = vsel %vm83, %v167, 0
    %v181 = vsel %vm83, %v168, 0
    %183 = vmatprep.subr.mxu0 %v170
    %184 = vmatpush1.msra.mxu0 %v169
    %185 = vmatprep.subr.mxu0 %v172
    %186 = vmatpush1.msra.mxu0 %v171
    %187 = vmatprep.subr.mxu0 %v174
    %188 = vmatpush1.msra.mxu0 %v173
    %189 = vmatprep.subr.mxu0 %v176
    %190 = vmatpush1.msra.mxu0 %v175
    %191 = vmatprep.subr.mxu0 0.0
    %192 = vmatpush1.msra.mxu0 0.0
    %193 = vmatprep.subr.mxu0 0.0
    %194 = vmatpush1.msra.mxu0 0.0
    %195 = vmatprep.subr.mxu0 0.0
    %196 = vmatpush1.msra.mxu0 0.0
    %197 = vmatprep.subr.mxu0 0.0
    %198 = vmatpush1.msra.mxu0 0.0
    %199 = vmatprep.subr.mxu0 0.0
    %200 = vmatpush1.msra.mxu0 0.0
    %201 = vmatprep.subr.mxu0 0.0
    %202 = vmatpush1.msra.mxu0 0.0
    %203 = vmatprep.subr.mxu0 0.0
    %204 = vmatpush1.msra.mxu0 0.0
    %205 = vmatprep.subr.mxu0 0.0
    %206 = vmatpush1.msra.mxu0 0.0
    %207 = vmatprep.subr.mxu0 0.0
    %208 = vmatpush1.msra.mxu0 0.0
    %209 = vmatprep.subr.mxu0 0.0
    %210 = vmatpush1.msra.mxu0 0.0
    %211 = vmatprep.subr.mxu0 0.0
    %212 = vmatpush1.msra.mxu0 0.0
    %213 = vmatprep.subr.mxu0 0.0
    %214 = vmatpush1.msra.mxu0 0.0
    %215 = vmatprep.subr.mxu0 0.0
    %216 = vmatpush1.msra.mxu0 0.0
    %217 = vmatprep.subr.mxu0 0.0
    %218 = vmatpush1.msra.mxu0 0.0
    %219 = vmatprep.subr.mxu0 0.0
    %220 = vmatpush1.msra.mxu0 0.0
    %221 = vmatprep.subr.mxu0 0.0
    %222 = vmatpush1.msra.mxu0 0.0
    %223 = vmatprep.subr.mxu0 0.0
    %224 = vmatpush1.msra.mxu0 0.0
    %225 = vmatprep.subr.mxu0 0.0
    %226 = vmatpush1.msra.mxu0 0.0
    %227 = vmatprep.subr.mxu0 0.0
    %228 = vmatpush1.msra.mxu0 0.0
    %229 = vmatprep.subr.mxu0 0.0
    %230 = vmatpush1.msra.mxu0 0.0
    %231 = vmatprep.subr.mxu0 0.0
    %232 = vmatpush1.msra.mxu0 0.0
    %233 = vmatprep.subr.mxu0 0.0
    %234 = vmatpush1.msra.mxu0 0.0
    %235 = vmatprep.subr.mxu0 0.0
    %236 = vmatpush1.msra.mxu0 0.0
    %237 = vmatprep.subr.mxu0 0.0
    %238 = vmatpush1.msra.mxu0 0.0
    %239 = vmatprep.subr.mxu0 0.0
    %240 = vmatpush1.msra.mxu0 0.0
    %241 = vmatprep.subr.mxu0 0.0
    %242 = vmatpush1.msra.mxu0 0.0
    %243 = vmatprep.subr.mxu0 0.0
    %244 = vmatpush1.msra.mxu0 0.0
    %245 = vmatprep.subr.mxu0 0.0
    %246 = vmatpush1.msra.mxu0 0.0
    %247 = vmatprep.mubr.f32.mxu0 0.0
    %248 = vmatmul.mubr.f32.gmra.mrb[0].mxu0 %v178
    %v249 = vpop.f32.mrb[0].mxu0
    %v250 = vadd.f32 0.0, %v249
    %v251 = vpop.f32.mrb[0].mxu0
    %v252 = vadd.f32 0.0, %v251
    %253 = vmatprep.mubr.f32.mxu0 0.0
    %254 = vmatmul.mubr.f32.gmra.mrb[0].mxu0 %v181
    %v255 = vpop.f32.mrb[0].mxu0
    %v256 = vadd.f32 0.0, %v255
    %v257 = vpop.f32.mrb[0].mxu0
    %v258 = vadd.f32 0.0, %v257
    %259 = vdwg.mxu0
    %v260 = vtanh.pop %v157
    %v261 = vtanh.pop %v163
    %v262 = vtanh.pop %v250
    %v263 = vtanh.pop %v256
    %v264 = vadd.f32 %v159, %v252
    %v265 = vadd.f32 %v165, %v258
    %v266 = vxor.u32 %v264, 2147483648
    %v267 = vxor.u32 %v265, 2147483648
    %v268 = vmul.f32 %v266, 1.442695
    %v269 = vpow.pop %v268
    %v270 = vmul.f32 %v267, 1.442695
    %v271 = vpow.pop %v270
    %v272 = vadd.f32 %v269, 1.0
    %v273 = vadd.f32 %v271, 1.0
    %v274 = vrcp.pop %v272
    %v275 = vmul.f32 1.0, %v274
    %v276 = vrcp.pop %v273
    %v277 = vmul.f32 1.0, %v276
    %v278 = vsub.f32 %v260, %v262
    %v279 = vsub.f32 %v261, %v263
    %v280 = vmul.f32 %v275, %v278
    %v281 = vmul.f32 %v277, %v279
    %v282 = vadd.f32 %v262, %v280
    %v283 = vadd.f32 %v263, %v281
    %284 = vst [vmem:[#allocation10] sm:$0xff] %v282
    %285 = vst [vmem:[#allocation10 + $0x8] sm:$0xff] %v283
    // Predicated region
    $region34: #{tpu_custom_call.1} parent=1 // pred_check
      _
    $region35: #{tpu_custom_call.1} parent=1 // pred_check_branch
      %287 = sbr.rel (0) target = $region37
    $region36: #{tpu_custom_call.1} parent=1 // pred_region
      %s289 = ssub.s32 256, 256
      %290 = vsyncadd [#allocation4], %s289
      %s291 = sshll.u32 [#allocation10], 4
      %s292 = int_to_ptr.vmem [resolvable:$true] %s291
      %297 = dma.vmem_to_hbm [thread:$0]  %s292, 256, %s4, [#allocation4], 128, 128, 8
    $region37: #{tpu_custom_call.1} parent=1 // pred_fallthru
      _
    // Predicated region
    $region38: #{tpu_custom_call.1} parent=1 // pred_check
      _
    $region39: #{tpu_custom_call.1} parent=1 // pred_check_branch
      %299 = sbr.rel (0) target = $region41
    $region40: #{tpu_custom_call.1} parent=1 // pred_region
      %300 = dma.done [#allocation4], 256
    $region41: #{tpu_custom_call.1} parent=1 // pred_fallthru
      _
    %301 = vsyncpa [#allocation3], 1
    %302 = vsyncpa [#allocation6], 1
    %303 = vsyncpa [#allocation9], 1
    %304 = vsyncpa [#allocation4], 1

// kernel: tpu_custom_call.1
$region0: #{tpu_custom_call.1}
  #allocation0 [shape = 'u32[]', space=smem, size = 0x4, offset = 0x4, fixed_abs, tag = 'smem constant byte address 0x4 - core index']
  #allocation1 [shape = 'u32[144,128]{1,0:T(1,128)}', space=vmem, size = 0x12000, scoped, tag = 'internal scratch']
  %s0 = inlined_call_operand.hbm [shape: f32[16,32], index: 0, kind: input, shape index: {}]
  %s1 = inlined_call_operand.hbm [shape: f32[16,32], index: 1, kind: input, shape index: {}]
  %s2 = inlined_call_operand.hbm [shape: f32[32,256], index: 2, kind: input, shape index: {}]
  %s3 = inlined_call_operand.hbm [shape: f32[32,256], index: 3, kind: input, shape index: {}]
  %s4 = inlined_call_operand.hbm [shape: f32[16,128], index: 4, kind: output, shape index: {}]
  %s5 = sld [smem:[#allocation0]]
  $region42: #{tpu_custom_call.1} parent=0
    _
  %s7 = ssub.s32 1, %s5
  %s8 = scalar_select 0, %s7, %s5
  $region1: #{tpu_custom_call.1} parent=0
    #allocation2 [shape = 'u8[8192]{0}', space=vmem, size = 0x2000, scoped, tag = 'input window, operand 0, single buffered']
    #allocation3 [shape = 's32[1]{0}', space=sflag, size = 0x4, scoped, tag = 'scoped memory for tpu_custom_call.1']
    #allocation4 [shape = 's32[1]{0}', space=sflag, size = 0x4, scoped, tag = 'scoped memory for tpu_custom_call.1']
    #allocation5 [shape = 'u8[8192]{0}', space=vmem, size = 0x2000, scoped, tag = 'input window, operand 1, single buffered']
    #allocation6 [shape = 's32[1]{0}', space=sflag, size = 0x4, scoped, tag = 'scoped memory for tpu_custom_call.1']
    #allocation7 [shape = 'u8[32768]{0}', space=vmem, size = 0x8000, scoped, tag = 'input window, operand 2, single buffered']
    #allocation8 [shape = 'u8[32768]{0}', space=vmem, size = 0x8000, scoped, tag = 'input window, operand 3, single buffered']
    #allocation9 [shape = 's32[1]{0}', space=sflag, size = 0x4, scoped, tag = 'scoped memory for tpu_custom_call.1']
    #allocation10 [shape = 'u8[8192]{0}', space=vmem, size = 0x2000, scoped, tag = 'output window, operand 0, single buffered']
    %9 = vsyncpa [#allocation3], 0
    %10 = vsyncpa [#allocation6], 0
    %11 = vsyncpa [#allocation9], 0
    %12 = vsyncpa [#allocation4], 0
    // Predicated region
    $region2: #{tpu_custom_call.1} parent=1 // pred_check
      _
    $region3: #{tpu_custom_call.1} parent=1 // pred_check_branch
      %14 = sbr.rel (0) target = $region5
    $region4: #{tpu_custom_call.1} parent=1 // pred_region
      %s16 = ssub.s32 256, 256
      %17 = vsyncadd [#allocation3], %s16
      %s18 = sshll.u32 [#allocation2], 4
      %s19 = int_to_ptr.vmem [resolvable:$true] %s18
      %24 = dma.hbm_to_vmem [thread:$0]  %s0, 256, %s19, [#allocation3], 128, 128, 8
    $region5: #{tpu_custom_call.1} parent=1 // pred_fallthru
      _
    // Predicated region
    $region6: #{tpu_custom_call.1} parent=1 // pred_check
      _
    $region7: #{tpu_custom_call.1} parent=1 // pred_check_branch
      %26 = sbr.rel (0) target = $region9
    $region8: #{tpu_custom_call.1} parent=1 // pred_region
      %s28 = ssub.s32 256, 256
      %29 = vsyncadd [#allocation6], %s28
      %s30 = sshll.u32 [#allocation5], 4
      %s31 = int_to_ptr.vmem [resolvable:$true] %s30
      %36 = dma.hbm_to_vmem [thread:$0]  %s1, 256, %s31, [#allocation6], 128, 128, 8
    $region9: #{tpu_custom_call.1} parent=1 // pred_fallthru
      _
    // Predicated region
    $region10: #{tpu_custom_call.1} parent=1 // pred_check
      _
    $region11: #{tpu_custom_call.1} parent=1 // pred_check_branch
      %38 = sbr.rel (0) target = $region13
    $region12: #{tpu_custom_call.1} parent=1 // pred_region
      %s40 = ssub.s32 1024, 1024
      %41 = vsyncadd [#allocation6], %s40
      %s42 = sshll.u32 [#allocation7], 4
      %s43 = int_to_ptr.vmem [resolvable:$true] %s42
      %48 = dma.hbm_to_vmem [thread:$0]  %s2, 1024, %s43, [#allocation6], 256, 256, 16
    $region13: #{tpu_custom_call.1} parent=1 // pred_fallthru
      _
    // Predicated region
    $region14: #{tpu_custom_call.1} parent=1 // pred_check
      _
    $region15: #{tpu_custom_call.1} parent=1 // pred_check_branch
      %50 = sbr.rel (0) target = $region17
    $region16: #{tpu_custom_call.1} parent=1 // pred_region
      %s52 = ssub.s32 1024, 1024
      %53 = vsyncadd [#allocation9], %s52
      %s54 = sshll.u32 [#allocation8], 4
      %s55 = int_to_ptr.vmem [resolvable:$true] %s54
      %60 = dma.hbm_to_vmem [thread:$0]  %s3, 1024, %s55, [#allocation9], 256, 256, 16
    $region17: #{tpu_custom_call.1} parent=1 // pred_fallthru
      _
    // Predicated region
    $region18: #{tpu_custom_call.1} parent=1 // pred_check
      _
    $region19: #{tpu_custom_call.1} parent=1 // pred_check_branch
      %62 = sbr.rel (0) target = $region21
    $region20: #{tpu_custom_call.1} parent=1 // pred_region
      %63 = dma.done [#allocation3], 256
    $region21: #{tpu_custom_call.1} parent=1 // pred_fallthru
      _
    // Predicated region
    $region22: #{tpu_custom_call.1} parent=1 // pred_check
      _
    $region23: #{tpu_custom_call.1} parent=1 // pred_check_branch
      %65 = sbr.rel (0) target = $region25
    $region24: #{tpu_custom_call.1} parent=1 // pred_region
      %66 = dma.done [#allocation6], 256
    $region25: #{tpu_custom_call.1} parent=1 // pred_fallthru
      _
    // Predicated region
    $region26: #{tpu_custom_call.1} parent=1 // pred_check
      _
    $region27: #{tpu_custom_call.1} parent=1 // pred_check_branch
      %68 = sbr.rel (0) target = $region29
    $region28: #{tpu_custom_call.1} parent=1 // pred_region
      %69 = dma.done [#allocation6], 1024
    $region29: #{tpu_custom_call.1} parent=1 // pred_fallthru
      _
    // Predicated region
    $region30: #{tpu_custom_call.1} parent=1 // pred_check
      _
    $region31: #{tpu_custom_call.1} parent=1 // pred_check_branch
      %71 = sbr.rel (0) target = $region33
    $region32: #{tpu_custom_call.1} parent=1 // pred_region
      %72 = dma.done [#allocation9], 1024
    $region33: #{tpu_custom_call.1} parent=1 // pred_fallthru
      _
    %v73 = vld [vmem:[#allocation2] sm:$0xff]
    %v74 = vld [vmem:[#allocation2 + $0x8] sm:$0xff]
    %v75 = vld [vmem:[#allocation7] sm:$0xff]
    %v76 = vld [vmem:[#allocation7 + $0x8] sm:$0xff]
    %v77 = vld [vmem:[#allocation7 + $0x10] sm:$0xff]
    %v78 = vld [vmem:[#allocation7 + $0x18] sm:$0xff]
    %v79 = vld [vmem:[#allocation7 + $0x20] sm:$0xff]
    %v80 = vld [vmem:[#allocation7 + $0x28] sm:$0xff]
    %v81 = vld [vmem:[#allocation7 + $0x30] sm:$0xff]
    %v82 = vld [vmem:[#allocation7 + $0x38] sm:$0xff]
    %vm83 = vcmask 261120
    %v85 = vsel %vm83, %v73, 0
    %v88 = vsel %vm83, %v74, 0
    %90 = vmatprep.subr.mxu0 %v76
    %91 = vmatpush1.msra.mxu0 %v75
    %92 = vmatprep.subr.mxu0 %v78
    %93 = vmatpush1.msra.mxu0 %v77
    %94 = vmatprep.subr.mxu0 %v80
    %95 = vmatpush1.msra.mxu0 %v79
    %96 = vmatprep.subr.mxu0 %v82
    %97 = vmatpush1.msra.mxu0 %v81
    %98 = vmatprep.subr.mxu0 0.0
    %99 = vmatpush1.msra.mxu0 0.0
    %100 = vmatprep.subr.mxu0 0.0
    %101 = vmatpush1.msra.mxu0 0.0
    %102 = vmatprep.subr.mxu0 0.0
    %103 = vmatpush1.msra.mxu0 0.0
    %104 = vmatprep.subr.mxu0 0.0
    %105 = vmatpush1.msra.mxu0 0.0
    %106 = vmatprep.subr.mxu0 0.0
    %107 = vmatpush1.msra.mxu0 0.0
    %108 = vmatprep.subr.mxu0 0.0
    %109 = vmatpush1.msra.mxu0 0.0
    %110 = vmatprep.subr.mxu0 0.0
    %111 = vmatpush1.msra.mxu0 0.0
    %112 = vmatprep.subr.mxu0 0.0
    %113 = vmatpush1.msra.mxu0 0.0
    %114 = vmatprep.subr.mxu0 0.0
    %115 = vmatpush1.msra.mxu0 0.0
    %116 = vmatprep.subr.mxu0 0.0
    %117 = vmatpush1.msra.mxu0 0.0
    %118 = vmatprep.subr.mxu0 0.0
    %119 = vmatpush1.msra.mxu0 0.0
    %120 = vmatprep.subr.mxu0 0.0
    %121 = vmatpush1.msra.mxu0 0.0
    %122 = vmatprep.subr.mxu0 0.0
    %123 = vmatpush1.msra.mxu0 0.0
    %124 = vmatprep.subr.mxu0 0.0
    %125 = vmatpush1.msra.mxu0 0.0
    %126 = vmatprep.subr.mxu0 0.0
    %127 = vmatpush1.msra.mxu0 0.0
    %128 = vmatprep.subr.mxu0 0.0
    %129 = vmatpush1.msra.mxu0 0.0
    %130 = vmatprep.subr.mxu0 0.0
    %131 = vmatpush1.msra.mxu0 0.0
    %132 = vmatprep.subr.mxu0 0.0
    %133 = vmatpush1.msra.mxu0 0.0
    %134 = vmatprep.subr.mxu0 0.0
    %135 = vmatpush1.msra.mxu0 0.0
    %136 = vmatprep.subr.mxu0 0.0
    %137 = vmatpush1.msra.mxu0 0.0
    %138 = vmatprep.subr.mxu0 0.0
    %139 = vmatpush1.msra.mxu0 0.0
    %140 = vmatprep.subr.mxu0 0.0
    %141 = vmatpush1.msra.mxu0 0.0
    %142 = vmatprep.subr.mxu0 0.0
    %143 = vmatpush1.msra.mxu0 0.0
    %144 = vmatprep.subr.mxu0 0.0
    %145 = vmatpush1.msra.mxu0 0.0
    %146 = vmatprep.subr.mxu0 0.0
    %147 = vmatpush1.msra.mxu0 0.0
    %148 = vmatprep.subr.mxu0 0.0
    %149 = vmatpush1.msra.mxu0 0.0
    %150 = vmatprep.subr.mxu0 0.0
    %151 = vmatpush1.msra.mxu0 0.0
    %152 = vmatprep.subr.mxu0 0.0
    %153 = vmatpush1.msra.mxu0 0.0
    %154 = vmatprep.mubr.f32.mxu0 0.0
    %155 = vmatmul.mubr.f32.gmra.mrb[0].mxu0 %v85
    %v156 = vpop.f32.mrb[0].mxu0
    %v157 = vadd.f32 0.0, %v156
    %v158 = vpop.f32.mrb[0].mxu0
    %v159 = vadd.f32 0.0, %v158
    %160 = vmatprep.mubr.f32.mxu0 0.0
    %161 = vmatmul.mubr.f32.gmra.mrb[0].mxu0 %v88
    %v162 = vpop.f32.mrb[0].mxu0
    %v163 = vadd.f32 0.0, %v162
    %v164 = vpop.f32.mrb[0].mxu0
    %v165 = vadd.f32 0.0, %v164
    %166 = vdwg.mxu0
    %v167 = vld [vmem:[#allocation5] sm:$0xff]
    %v168 = vld [vmem:[#allocation5 + $0x8] sm:$0xff]
    %v169 = vld [vmem:[#allocation8] sm:$0xff]
    %v170 = vld [vmem:[#allocation8 + $0x8] sm:$0xff]
    %v171 = vld [vmem:[#allocation8 + $0x10] sm:$0xff]
    %v172 = vld [vmem:[#allocation8 + $0x18] sm:$0xff]
    %v173 = vld [vmem:[#allocation8 + $0x20] sm:$0xff]
    %v174 = vld [vmem:[#allocation8 + $0x28] sm:$0xff]
    %v175 = vld [vmem:[#allocation8 + $0x30] sm:$0xff]
    %v176 = vld [vmem:[#allocation8 + $0x38] sm:$0xff]
    %v178 = vsel %vm83, %v167, 0
    %v181 = vsel %vm83, %v168, 0
    %183 = vmatprep.subr.mxu0 %v170
    %184 = vmatpush1.msra.mxu0 %v169
    %185 = vmatprep.subr.mxu0 %v172
    %186 = vmatpush1.msra.mxu0 %v171
    %187 = vmatprep.subr.mxu0 %v174
    %188 = vmatpush1.msra.mxu0 %v173
    %189 = vmatprep.subr.mxu0 %v176
    %190 = vmatpush1.msra.mxu0 %v175
    %191 = vmatprep.subr.mxu0 0.0
    %192 = vmatpush1.msra.mxu0 0.0
    %193 = vmatprep.subr.mxu0 0.0
    %194 = vmatpush1.msra.mxu0 0.0
    %195 = vmatprep.subr.mxu0 0.0
    %196 = vmatpush1.msra.mxu0 0.0
    %197 = vmatprep.subr.mxu0 0.0
    %198 = vmatpush1.msra.mxu0 0.0
    %199 = vmatprep.subr.mxu0 0.0
    %200 = vmatpush1.msra.mxu0 0.0
    %201 = vmatprep.subr.mxu0 0.0
    %202 = vmatpush1.msra.mxu0 0.0
    %203 = vmatprep.subr.mxu0 0.0
    %204 = vmatpush1.msra.mxu0 0.0
    %205 = vmatprep.subr.mxu0 0.0
    %206 = vmatpush1.msra.mxu0 0.0
    %207 = vmatprep.subr.mxu0 0.0
    %208 = vmatpush1.msra.mxu0 0.0
    %209 = vmatprep.subr.mxu0 0.0
    %210 = vmatpush1.msra.mxu0 0.0
    %211 = vmatprep.subr.mxu0 0.0
    %212 = vmatpush1.msra.mxu0 0.0
    %213 = vmatprep.subr.mxu0 0.0
    %214 = vmatpush1.msra.mxu0 0.0
    %215 = vmatprep.subr.mxu0 0.0
    %216 = vmatpush1.msra.mxu0 0.0
    %217 = vmatprep.subr.mxu0 0.0
    %218 = vmatpush1.msra.mxu0 0.0
    %219 = vmatprep.subr.mxu0 0.0
    %220 = vmatpush1.msra.mxu0 0.0
    %221 = vmatprep.subr.mxu0 0.0
    %222 = vmatpush1.msra.mxu0 0.0
    %223 = vmatprep.subr.mxu0 0.0
    %224 = vmatpush1.msra.mxu0 0.0
    %225 = vmatprep.subr.mxu0 0.0
    %226 = vmatpush1.msra.mxu0 0.0
    %227 = vmatprep.subr.mxu0 0.0
    %228 = vmatpush1.msra.mxu0 0.0
    %229 = vmatprep.subr.mxu0 0.0
    %230 = vmatpush1.msra.mxu0 0.0
    %231 = vmatprep.subr.mxu0 0.0
    %232 = vmatpush1.msra.mxu0 0.0
    %233 = vmatprep.subr.mxu0 0.0
    %234 = vmatpush1.msra.mxu0 0.0
    %235 = vmatprep.subr.mxu0 0.0
    %236 = vmatpush1.msra.mxu0 0.0
    %237 = vmatprep.subr.mxu0 0.0
    %238 = vmatpush1.msra.mxu0 0.0
    %239 = vmatprep.subr.mxu0 0.0
    %240 = vmatpush1.msra.mxu0 0.0
    %241 = vmatprep.subr.mxu0 0.0
    %242 = vmatpush1.msra.mxu0 0.0
    %243 = vmatprep.subr.mxu0 0.0
    %244 = vmatpush1.msra.mxu0 0.0
    %245 = vmatprep.subr.mxu0 0.0
    %246 = vmatpush1.msra.mxu0 0.0
    %247 = vmatprep.mubr.f32.mxu0 0.0
    %248 = vmatmul.mubr.f32.gmra.mrb[0].mxu0 %v178
    %v249 = vpop.f32.mrb[0].mxu0
    %v250 = vadd.f32 0.0, %v249
    %v251 = vpop.f32.mrb[0].mxu0
    %v252 = vadd.f32 0.0, %v251
    %253 = vmatprep.mubr.f32.mxu0 0.0
    %254 = vmatmul.mubr.f32.gmra.mrb[0].mxu0 %v181
    %v255 = vpop.f32.mrb[0].mxu0
    %v256 = vadd.f32 0.0, %v255
    %v257 = vpop.f32.mrb[0].mxu0
    %v258 = vadd.f32 0.0, %v257
    %259 = vdwg.mxu0
    %v260 = vtanh.pop %v157
    %v261 = vtanh.pop %v163
    %v262 = vtanh.pop %v250
    %v263 = vtanh.pop %v256
    %v264 = vadd.f32 %v159, %v252
    %v265 = vadd.f32 %v165, %v258
    %v266 = vxor.u32 %v264, 2147483648
    %v267 = vxor.u32 %v265, 2147483648
    %v268 = vmul.f32 %v266, 1.442695
    %v269 = vpow.pop %v268
    %v270 = vmul.f32 %v267, 1.442695
    %v271 = vpow.pop %v270
    %v272 = vadd.f32 %v269, 1.0
    %v273 = vadd.f32 %v271, 1.0
    %v274 = vrcp.pop %v272
    %v275 = vmul.f32 1.0, %v274
    %v276 = vrcp.pop %v273
    %v277 = vmul.f32 1.0, %v276
    %v278 = vsub.f32 %v260, %v262
    %v279 = vsub.f32 %v261, %v263
    %v280 = vmul.f32 %v275, %v278
    %v281 = vmul.f32 %v277, %v279
    %v282 = vadd.f32 %v262, %v280
    %v283 = vadd.f32 %v263, %v281
    %284 = vst [vmem:[#allocation10] sm:$0xff] %v282
    %285 = vst [vmem:[#allocation10 + $0x8] sm:$0xff] %v283
    // Predicated region
    $region34: #{tpu_custom_call.1} parent=1 // pred_check
      _
    $region35: #{tpu_custom_call.1} parent=1 // pred_check_branch
      %287 = sbr.rel (0) target = $region37
    $region36: #{tpu_custom_call.1} parent=1 // pred_region
      %s289 = ssub.s32 256, 256
      %290 = vsyncadd [#allocation4], %s289
      %s291 = sshll.u32 [#allocation10], 4
      %s292 = int_to_ptr.vmem [resolvable:$true] %s291
      %297 = dma.vmem_to_hbm [thread:$0]  %s292, 256, %s4, [#allocation4], 128, 128, 8
    $region37: #{tpu_custom_call.1} parent=1 // pred_fallthru
      _
    // Predicated region
    $region38: #{tpu_custom_call.1} parent=1 // pred_check
      _
    $region39: #{tpu_custom_call.1} parent=1 // pred_check_branch
      %299 = sbr.rel (0) target = $region41
    $region40: #{tpu_custom_call.1} parent=1 // pred_region
      %300 = dma.done [#allocation4], 256
    $region41: #{tpu_custom_call.1} parent=1 // pred_fallthru
      _
    %301 = vsyncpa [#allocation3], 1
    %302 = vsyncpa [#allocation6], 1
    %303 = vsyncpa [#allocation9], 1
    %304 = vsyncpa [#allocation4], 1

</llo_original>
